<compile_context>
chip_gen: v5e
topology: v5e:2x2
jax: 0.10.0
libtpu: 0.0.40
codegen_flags: <defaults>
</compile_context>

<pallas_src>
import functools

import numpy as np

import jax
import jax.numpy as jnp
from jax.experimental import pallas as pl
from jax.experimental.pallas import tpu as pltpu

GRID_MIN = -2.0
GRID_MAX = 2.0
NUM_GRIDS = 8
LN_EPS = 1e-5  # PyTorch nn.LayerNorm default


def _round_up(n, m):
    return ((n + m - 1) // m) * m


def fastkan_kernel(x_ref, ln_w_ref, ln_b_ref, w_spline_ref, base_w_ref,
                   base_b_ref, out_ref, slab_ref, *, grid_vals, denom):
    x = x_ref[...].astype(jnp.float32)                      # (TB, D)
    D = x.shape[-1]

    # ---- LayerNorm over the feature (lane) axis (biased var, like PyTorch) --
    mean = jnp.mean(x, axis=-1, keepdims=True)
    xc = x - mean
    var = jnp.mean(xc * xc, axis=-1, keepdims=True)
    xn = xc * jax.lax.rsqrt(var + LN_EPS)
    xn = xn * ln_w_ref[...].astype(jnp.float32) + ln_b_ref[...].astype(jnp.float32)

    # ---- RBF basis for all grid points, packed into a lane-dense slab -------
    # slab column g*D + d = exp(-((xn[:, d] - grid[g]) / denom)^2), matching
    # the (G*D, O) repack of the spline weight done in the wrapper.
    inv_denom = 1.0 / denom
    xs = xn * inv_denom                                     # hoisted scaling
    for g, gv in enumerate(grid_vals):                      # G is small: unrolled
        diff = xs - (gv * inv_denom)
        slab_ref[:, g * D:(g + 1) * D] = jnp.exp(-(diff * diff))

    # ---- Spline path: single K = G*D bf16 MXU contraction -------------------
    basis = slab_ref[...].astype(jnp.bfloat16)              # (TB, G*D)
    acc = jnp.dot(basis, w_spline_ref[...],
                  preferred_element_type=jnp.float32)       # (TB, O_pad) f32

    # ---- Base path: silu(x) @ W_base^T + b (bf16 operands, f32 accumulate) --
    base_in = (x * jax.nn.sigmoid(x)).astype(jnp.bfloat16)
    acc = acc + jnp.dot(base_in, base_w_ref[...],
                        preferred_element_type=jnp.float32)
    acc = acc + base_b_ref[...].astype(jnp.float32)

    out_ref[...] = acc.astype(out_ref.dtype)


def fastkan_layer(x, ln_w, ln_b, spline_w, base_w, base_b,
                  grid_min=GRID_MIN, grid_max=GRID_MAX, num_grids=NUM_GRIDS,
                  block_b=256):
    """x: (B, D). spline_w: (O, D*G) (PyTorch layout). base_w: (O, D)."""
    B, D = x.shape
    O = spline_w.shape[0]
    G = num_grids
    denom = (grid_max - grid_min) / (G - 1)
    grid_vals = tuple(float(v) for v in np.linspace(grid_min, grid_max, G))

    # Pad the output dim to a lane-dense multiple of 128 (unmasked vst).
    O_pad = _round_up(O, 128)

    # Repack spline weight: (O, D*G) [flat = d*G + g] -> (G*D, O_pad)
    # [flat = g*D + d], bf16 for the MXU.
    # TODO(synk): in production, do this repack once at parameter init, not per call.
    w_spline = spline_w.T.reshape(D, G, O).transpose(1, 0, 2).reshape(G * D, O)
    w_spline = jnp.pad(w_spline, ((0, 0), (0, O_pad - O))).astype(jnp.bfloat16)
    base_wT = jnp.pad(base_w.T, ((0, 0), (0, O_pad - O))).astype(jnp.bfloat16)
    base_b_p = jnp.pad(base_b.reshape(1, O),
                       ((0, 0), (0, O_pad - O))).astype(jnp.float32)

    # Batch tiling (double-buffered pipeline; "parallel" for megacore/dual-TC).
    TB = min(block_b, _round_up(B, 8))
    B_pad = _round_up(B, TB)
    x_p = jnp.pad(x, ((0, B_pad - B), (0, 0))) if B_pad != B else x
    n_tiles = B_pad // TB

    # Explicit VMEM budget with headroom: double-buffered x/out tiles +
    # resident bf16 weights + the f32 basis slab scratch.  Capped at 64 MiB
    # (v7x physical VMEM).
    est = (2 * TB * D * 4                       # x tiles (f32, double-buffered)
           + 2 * TB * O_pad * 4                 # out tiles
           + 2 * (G * D * O_pad + D * O_pad) * 2  # bf16 weights (conservative 2x)
           + 2 * (2 * D + O_pad) * 4            # ln params + bias
           + TB * G * D * 4)                    # basis slab scratch
    vmem_limit = int(min(64 << 20, max(16 << 20, 2 * est + (4 << 20))))

    kernel = functools.partial(fastkan_kernel, grid_vals=grid_vals, denom=denom)
    out = pl.pallas_call(
        kernel,
        out_shape=jax.ShapeDtypeStruct((B_pad, O_pad), x.dtype),
        grid=(n_tiles,),
        in_specs=[
            pl.BlockSpec((TB, D), lambda i: (i, 0)),         # x tile
            pl.BlockSpec((1, D), lambda i: (0, 0)),          # layernorm weight
            pl.BlockSpec((1, D), lambda i: (0, 0)),          # layernorm bias
            pl.BlockSpec((G * D, O_pad), lambda i: (0, 0)),  # spline W (G*D, O_pad) bf16
            pl.BlockSpec((D, O_pad), lambda i: (0, 0)),      # base W^T bf16
            pl.BlockSpec((1, O_pad), lambda i: (0, 0)),      # base bias
        ],
        out_specs=pl.BlockSpec((TB, O_pad), lambda i: (i, 0)),
        scratch_shapes=[pltpu.VMEM((TB, G * D), jnp.float32)],
        compiler_params=pltpu.CompilerParams(
            dimension_semantics=("parallel",),
            vmem_limit_bytes=vmem_limit),
    )(x_p, ln_w.reshape(1, D).astype(jnp.float32),
      ln_b.reshape(1, D).astype(jnp.float32), w_spline, base_wT, base_b_p)

    return out[:B, :O]


def fastkan_reference(x, ln_w, ln_b, spline_w, base_w, base_b):
    """Pure-JAX reference matching the PyTorch forward exactly (all f32)."""
    G = NUM_GRIDS
    denom = (GRID_MAX - GRID_MIN) / (G - 1)
    grid = jnp.linspace(GRID_MIN, GRID_MAX, G)
    mean = jnp.mean(x, -1, keepdims=True)
    var = jnp.mean((x - mean) ** 2, -1, keepdims=True)
    xn = (x - mean) / jnp.sqrt(var + LN_EPS) * ln_w + ln_b
    basis = jnp.exp(-(((xn[..., None] - grid) / denom) ** 2))   # (B, D, G)
    flat = basis.reshape(x.shape[0], -1)                        # d*G + g order
    ret = flat @ spline_w.T
    base = jax.nn.silu(x) @ base_w.T + base_b
    return ret + base


if __name__ == "__main__":
    B, D, O, G = 8, 32, 64, NUM_GRIDS

    key = jax.random.PRNGKey(0)
    kx, ks, kbw, kbb, klw, klb = jax.random.split(key, 6)

    x = jax.random.normal(kx, (B, D), jnp.float32)

    # SplineLinear: trunc_normal_(std=0.1), no bias.
    spline_w = 0.1 * jax.random.truncated_normal(ks, -2.0, 2.0, (O, D * G),
                                                 jnp.float32)
    # nn.Linear default-ish init for the base path.
    bound = 1.0 / (D ** 0.5)
    base_w = jax.random.uniform(kbw, (O, D), jnp.float32, -bound, bound)
    base_b = jax.random.uniform(kbb, (O,), jnp.float32, -bound, bound)
    # LayerNorm params (init is ones/zeros; perturb to exercise the affine op).
    ln_w = 1.0 + 0.1 * jax.random.normal(klw, (D,), jnp.float32)
    ln_b = 0.1 * jax.random.normal(klb, (D,), jnp.float32)

    out = fastkan_layer(x, ln_w, ln_b, spline_w, base_w, base_b)
    out = jax.block_until_ready(out)

    ref = fastkan_reference(x, ln_w, ln_b, spline_w, base_w, base_b)
    assert out.shape == (B, O)
    # bf16 MXU operands -> loosened tolerance vs the pure-f32 reference.
    max_err = float(jnp.max(jnp.abs(out - ref)))
    assert jnp.allclose(out, ref, rtol=2e-2, atol=2e-2), (
        f"mismatch vs reference (max abs err = {max_err:.3e})")

    print("KERNEL_OK")
</pallas_src>

<mosaic_0001>
module attributes {stable_mosaic.version = 11 : i64} {
  func.func @fastkan_kernel(%arg0: i32, %arg1: memref<8x32xf32, #tpu.memory_space<vmem>>, %arg2: memref<1x32xf32, #tpu.memory_space<vmem>>, %arg3: memref<1x32xf32, #tpu.memory_space<vmem>>, %arg4: memref<256x128xbf16, #tpu.memory_space<vmem>>, %arg5: memref<32x128xbf16, #tpu.memory_space<vmem>>, %arg6: memref<1x128xf32, #tpu.memory_space<vmem>>, %arg7: memref<8x128xf32, #tpu.memory_space<vmem>>, %arg8: memref<8x256xf32, #tpu.memory_space<vmem>>) attributes {dimension_semantics = [#tpu.dimension_semantics<parallel>], iteration_bounds = array<i64: 1>, scalar_prefetch = 0 : i64, scratch_operands = 1 : i64, tpu.core_type = #tpu.core_type<tc>, window_params = [{transform_indices = @transform_0, window_bounds = array<i64: 8, 32>}, {pipeline_mode = #tpu.pipeline_mode<synchronous>, transform_indices = @transform_1, window_bounds = array<i64: 1, 32>}, {pipeline_mode = #tpu.pipeline_mode<synchronous>, transform_indices = @transform_2, window_bounds = array<i64: 1, 32>}, {pipeline_mode = #tpu.pipeline_mode<synchronous>, transform_indices = @transform_3, window_bounds = array<i64: 256, 128>}, {pipeline_mode = #tpu.pipeline_mode<synchronous>, transform_indices = @transform_4, window_bounds = array<i64: 32, 128>}, {pipeline_mode = #tpu.pipeline_mode<synchronous>, transform_indices = @transform_5, window_bounds = array<i64: 1, 128>}, {transform_indices = @transform_6, window_bounds = array<i64: 8, 128>}]} {
    %c0 = arith.constant 0 : index
    %c0_0 = arith.constant 0 : index
    %0 = vector.load %arg1[%c0, %c0_0] : memref<8x32xf32, #tpu.memory_space<vmem>>, vector<8x32xf32>
    %cst = arith.constant dense<0.000000e+00> : vector<8xf32>
    %1 = vector.multi_reduction <add>, %0, %cst [1] : vector<8x32xf32> to vector<8xf32>
    %2 = vector.shape_cast %1 : vector<8xf32> to vector<8x1xf32>
    %cst_1 = arith.constant 3.200000e+01 : f32
    %3 = vector.broadcast %cst_1 : f32 to vector<8x1xf32>
    %4 = arith.divf %2, %3 : vector<8x1xf32>
    %5 = vector.broadcast %4 : vector<8x1xf32> to vector<8x32xf32>
    %6 = arith.subf %0, %5 : vector<8x32xf32>
    %7 = arith.mulf %6, %6 : vector<8x32xf32>
    %cst_2 = arith.constant dense<0.000000e+00> : vector<8xf32>
    %8 = vector.multi_reduction <add>, %7, %cst_2 [1] : vector<8x32xf32> to vector<8xf32>
    %9 = vector.shape_cast %8 : vector<8xf32> to vector<8x1xf32>
    %cst_3 = arith.constant 3.200000e+01 : f32
    %10 = vector.broadcast %cst_3 : f32 to vector<8x1xf32>
    %11 = arith.divf %9, %10 : vector<8x1xf32>
    %cst_4 = arith.constant 9.99999974E-6 : f32
    %12 = vector.broadcast %cst_4 : f32 to vector<8x1xf32>
    %13 = arith.addf %11, %12 : vector<8x1xf32>
    %14 = math.rsqrt %13 : vector<8x1xf32>
    %15 = vector.broadcast %14 : vector<8x1xf32> to vector<8x32xf32>
    %16 = arith.mulf %6, %15 : vector<8x32xf32>
    %c0_5 = arith.constant 0 : index
    %c0_6 = arith.constant 0 : index
    %17 = vector.load %arg2[%c0_5, %c0_6] : memref<1x32xf32, #tpu.memory_space<vmem>>, vector<1x32xf32>
    %18 = vector.broadcast %17 : vector<1x32xf32> to vector<8x32xf32>
    %19 = arith.mulf %16, %18 : vector<8x32xf32>
    %c0_7 = arith.constant 0 : index
    %c0_8 = arith.constant 0 : index
    %20 = vector.load %arg3[%c0_7, %c0_8] : memref<1x32xf32, #tpu.memory_space<vmem>>, vector<1x32xf32>
    %21 = vector.broadcast %20 : vector<1x32xf32> to vector<8x32xf32>
    %22 = arith.addf %19, %21 : vector<8x32xf32>
    %cst_9 = arith.constant 1.750000e+00 : f32
    %23 = vector.broadcast %cst_9 : f32 to vector<8x32xf32>
    %24 = arith.mulf %22, %23 : vector<8x32xf32>
    %cst_10 = arith.constant -3.500000e+00 : f32
    %25 = vector.broadcast %cst_10 : f32 to vector<8x32xf32>
    %26 = arith.subf %24, %25 : vector<8x32xf32>
    %27 = arith.mulf %26, %26 : vector<8x32xf32>
    %cst_11 = arith.constant 0.000000e+00 : f32
    %28 = vector.broadcast %cst_11 : f32 to vector<8x32xf32>
    %29 = arith.subf %28, %27 : vector<8x32xf32>
    %30 = math.exp %29 : vector<8x32xf32>
    %c0_12 = arith.constant 0 : index
    %c0_13 = arith.constant 0 : index
    %31 = vector.load %arg8[%c0_12, %c0_13] : memref<8x256xf32, #tpu.memory_space<vmem>>, vector<8x32xf32>
    tpu.vector_store %arg8[%c0_12, %c0_13], %30 {strides = array<i32>} : memref<8x256xf32, #tpu.memory_space<vmem>>, vector<8x32xf32>,
    %cst_14 = arith.constant -2.500000e+00 : f32
    %32 = vector.broadcast %cst_14 : f32 to vector<8x32xf32>
    %33 = arith.subf %24, %32 : vector<8x32xf32>
    %34 = arith.mulf %33, %33 : vector<8x32xf32>
    %cst_15 = arith.constant 0.000000e+00 : f32
    %35 = vector.broadcast %cst_15 : f32 to vector<8x32xf32>
    %36 = arith.subf %35, %34 : vector<8x32xf32>
    %37 = math.exp %36 : vector<8x32xf32>
    %c0_16 = arith.constant 0 : index
    %c32 = arith.constant 32 : index
    %38 = vector.load %arg8[%c0_16, %c32] : memref<8x256xf32, #tpu.memory_space<vmem>>, vector<8x32xf32>
    tpu.vector_store %arg8[%c0_16, %c32], %37 {strides = array<i32>} : memref<8x256xf32, #tpu.memory_space<vmem>>, vector<8x32xf32>,
    %cst_17 = arith.constant -1.500000e+00 : f32
    %39 = vector.broadcast %cst_17 : f32 to vector<8x32xf32>
    %40 = arith.subf %24, %39 : vector<8x32xf32>
    %41 = arith.mulf %40, %40 : vector<8x32xf32>
    %cst_18 = arith.constant 0.000000e+00 : f32
    %42 = vector.broadcast %cst_18 : f32 to vector<8x32xf32>
    %43 = arith.subf %42, %41 : vector<8x32xf32>
    %44 = math.exp %43 : vector<8x32xf32>
    %c0_19 = arith.constant 0 : index
    %c64 = arith.constant 64 : index
    %45 = vector.load %arg8[%c0_19, %c64] : memref<8x256xf32, #tpu.memory_space<vmem>>, vector<8x32xf32>
    tpu.vector_store %arg8[%c0_19, %c64], %44 {strides = array<i32>} : memref<8x256xf32, #tpu.memory_space<vmem>>, vector<8x32xf32>,
    %cst_20 = arith.constant -5.000000e-01 : f32
    %46 = vector.broadcast %cst_20 : f32 to vector<8x32xf32>
    %47 = arith.subf %24, %46 : vector<8x32xf32>
    %48 = arith.mulf %47, %47 : vector<8x32xf32>
    %cst_21 = arith.constant 0.000000e+00 : f32
    %49 = vector.broadcast %cst_21 : f32 to vector<8x32xf32>
    %50 = arith.subf %49, %48 : vector<8x32xf32>
    %51 = math.exp %50 : vector<8x32xf32>
    %c0_22 = arith.constant 0 : index
    %c96 = arith.constant 96 : index
    %52 = vector.load %arg8[%c0_22, %c96] : memref<8x256xf32, #tpu.memory_space<vmem>>, vector<8x32xf32>
    tpu.vector_store %arg8[%c0_22, %c96], %51 {strides = array<i32>} : memref<8x256xf32, #tpu.memory_space<vmem>>, vector<8x32xf32>,
    %cst_23 = arith.constant 5.000000e-01 : f32
    %53 = vector.broadcast %cst_23 : f32 to vector<8x32xf32>
    %54 = arith.subf %24, %53 : vector<8x32xf32>
    %55 = arith.mulf %54, %54 : vector<8x32xf32>
    %cst_24 = arith.constant 0.000000e+00 : f32
    %56 = vector.broadcast %cst_24 : f32 to vector<8x32xf32>
    %57 = arith.subf %56, %55 : vector<8x32xf32>
    %58 = math.exp %57 : vector<8x32xf32>
    %c0_25 = arith.constant 0 : index
    %c128 = arith.constant 128 : index
    %59 = vector.load %arg8[%c0_25, %c128] : memref<8x256xf32, #tpu.memory_space<vmem>>, vector<8x32xf32>
    tpu.vector_store %arg8[%c0_25, %c128], %58 {strides = array<i32>} : memref<8x256xf32, #tpu.memory_space<vmem>>, vector<8x32xf32>,
    %cst_26 = arith.constant 1.500000e+00 : f32
    %60 = vector.broadcast %cst_26 : f32 to vector<8x32xf32>
    %61 = arith.subf %24, %60 : vector<8x32xf32>
    %62 = arith.mulf %61, %61 : vector<8x32xf32>
    %cst_27 = arith.constant 0.000000e+00 : f32
    %63 = vector.broadcast %cst_27 : f32 to vector<8x32xf32>
    %64 = arith.subf %63, %62 : vector<8x32xf32>
    %65 = math.exp %64 : vector<8x32xf32>
    %c0_28 = arith.constant 0 : index
    %c160 = arith.constant 160 : index
    %66 = vector.load %arg8[%c0_28, %c160] : memref<8x256xf32, #tpu.memory_space<vmem>>, vector<8x32xf32>
    tpu.vector_store %arg8[%c0_28, %c160], %65 {strides = array<i32>} : memref<8x256xf32, #tpu.memory_space<vmem>>, vector<8x32xf32>,
    %cst_29 = arith.constant 2.500000e+00 : f32
    %67 = vector.broadcast %cst_29 : f32 to vector<8x32xf32>
    %68 = arith.subf %24, %67 : vector<8x32xf32>
    %69 = arith.mulf %68, %68 : vector<8x32xf32>
    %cst_30 = arith.constant 0.000000e+00 : f32
    %70 = vector.broadcast %cst_30 : f32 to vector<8x32xf32>
    %71 = arith.subf %70, %69 : vector<8x32xf32>
    %72 = math.exp %71 : vector<8x32xf32>
    %c0_31 = arith.constant 0 : index
    %c192 = arith.constant 192 : index
    %73 = vector.load %arg8[%c0_31, %c192] : memref<8x256xf32, #tpu.memory_space<vmem>>, vector<8x32xf32>
    tpu.vector_store %arg8[%c0_31, %c192], %72 {strides = array<i32>} : memref<8x256xf32, #tpu.memory_space<vmem>>, vector<8x32xf32>,
    %cst_32 = arith.constant 3.500000e+00 : f32
    %74 = vector.broadcast %cst_32 : f32 to vector<8x32xf32>
    %75 = arith.subf %24, %74 : vector<8x32xf32>
    %76 = arith.mulf %75, %75 : vector<8x32xf32>
    %cst_33 = arith.constant 0.000000e+00 : f32
    %77 = vector.broadcast %cst_33 : f32 to vector<8x32xf32>
    %78 = arith.subf %77, %76 : vector<8x32xf32>
    %79 = math.exp %78 : vector<8x32xf32>
    %c0_34 = arith.constant 0 : index
    %c224 = arith.constant 224 : index
    %80 = vector.load %arg8[%c0_34, %c224] : memref<8x256xf32, #tpu.memory_space<vmem>>, vector<8x32xf32>
    tpu.vector_store %arg8[%c0_34, %c224], %79 {strides = array<i32>} : memref<8x256xf32, #tpu.memory_space<vmem>>, vector<8x32xf32>,
    %c0_35 = arith.constant 0 : index
    %c0_36 = arith.constant 0 : index
    %81 = vector.load %arg8[%c0_35, %c0_36] : memref<8x256xf32, #tpu.memory_space<vmem>>, vector<8x256xf32>
    %82 = arith.truncf %81 : vector<8x256xf32> to vector<8x256xbf16>
    %c0_37 = arith.constant 0 : index
    %c0_38 = arith.constant 0 : index
    %83 = vector.load %arg4[%c0_37, %c0_38] : memref<256x128xbf16, #tpu.memory_space<vmem>>, vector<256x128xbf16>
    %cst_39 = arith.constant dense<0.000000e+00> : vector<8x128xf32>
    %84 = tpu.matmul %82, %83, %cst_39 {dimension_numbers = #tpu.dot_dimension_numbers<[1], [0], [0], [1], [0, 0, 1, 1], [], []>} : vector<8x256xbf16>, vector<256x128xbf16>, vector<8x128xf32> -> vector<8x128xf32>
    %85 = arith.negf %0 : vector<8x32xf32>
    %86 = math.exp %85 : vector<8x32xf32>
    %cst_40 = arith.constant 1.000000e+00 : f32
    %87 = vector.broadcast %cst_40 : f32 to vector<8x32xf32>
    %88 = arith.addf %87, %86 : vector<8x32xf32>
    %89 = arith.divf %87, %88 : vector<8x32xf32>
    %90 = arith.mulf %0, %89 : vector<8x32xf32>
    %91 = arith.truncf %90 : vector<8x32xf32> to vector<8x32xbf16>
    %c0_41 = arith.constant 0 : index
    %c0_42 = arith.constant 0 : index
    %92 = vector.load %arg5[%c0_41, %c0_42] : memref<32x128xbf16, #tpu.memory_space<vmem>>, vector<32x128xbf16>
    %cst_43 = arith.constant dense<0.000000e+00> : vector<8x128xf32>
    %93 = tpu.matmul %91, %92, %cst_43 {dimension_numbers = #tpu.dot_dimension_numbers<[1], [0], [0], [1], [0, 0, 1, 1], [], []>} : vector<8x32xbf16>, vector<32x128xbf16>, vector<8x128xf32> -> vector<8x128xf32>
    %94 = arith.addf %84, %93 : vector<8x128xf32>
    %c0_44 = arith.constant 0 : index
    %c0_45 = arith.constant 0 : index
    %95 = vector.load %arg6[%c0_44, %c0_45] : memref<1x128xf32, #tpu.memory_space<vmem>>, vector<1x128xf32>
    %96 = vector.broadcast %95 : vector<1x128xf32> to vector<8x128xf32>
    %97 = arith.addf %94, %96 : vector<8x128xf32>
    %c0_46 = arith.constant 0 : index
    %c0_47 = arith.constant 0 : index
    %98 = vector.load %arg7[%c0_46, %c0_47] : memref<8x128xf32, #tpu.memory_space<vmem>>, vector<8x128xf32>
    tpu.vector_store %arg7[%c0_46, %c0_47], %97 {strides = array<i32>} : memref<8x128xf32, #tpu.memory_space<vmem>>, vector<8x128xf32>,
    return
  }
  func.func @transform_0(%arg0: i32) -> (i32, i32) {
    %c0_i32 = arith.constant 0 : i32
    %c0_i32_0 = arith.constant 0 : i32
    return %arg0, %c0_i32 : i32, i32
  }
  func.func @transform_1(%arg0: i32) -> (i32, i32) {
    %c0_i32 = arith.constant 0 : i32
    %c0_i32_0 = arith.constant 0 : i32
    %c0_i32_1 = arith.constant 0 : i32
    return %c0_i32, %c0_i32_0 : i32, i32
  }
  func.func @transform_2(%arg0: i32) -> (i32, i32) {
    %c0_i32 = arith.constant 0 : i32
    %c0_i32_0 = arith.constant 0 : i32
    %c0_i32_1 = arith.constant 0 : i32
    return %c0_i32, %c0_i32_0 : i32, i32
  }
  func.func @transform_3(%arg0: i32) -> (i32, i32) {
    %c0_i32 = arith.constant 0 : i32
    %c0_i32_0 = arith.constant 0 : i32
    %c0_i32_1 = arith.constant 0 : i32
    return %c0_i32, %c0_i32_0 : i32, i32
  }
  func.func @transform_4(%arg0: i32) -> (i32, i32) {
    %c0_i32 = arith.constant 0 : i32
    %c0_i32_0 = arith.constant 0 : i32
    %c0_i32_1 = arith.constant 0 : i32
    return %c0_i32, %c0_i32_0 : i32, i32
  }
  func.func @transform_5(%arg0: i32) -> (i32, i32) {
    %c0_i32 = arith.constant 0 : i32
    %c0_i32_0 = arith.constant 0 : i32
    %c0_i32_1 = arith.constant 0 : i32
    return %c0_i32, %c0_i32_0 : i32, i32
  }
  func.func @transform_6(%arg0: i32) -> (i32, i32) {
    %c0_i32 = arith.constant 0 : i32
    %c0_i32_0 = arith.constant 0 : i32
    return %arg0, %c0_i32 : i32, i32
  }
}

</mosaic_0001>

<llo_original>
// kernel: tpu_custom_call.1
$region0: #{tpu_custom_call.1}
  #allocation0 [shape = 'u32[]', space=smem, size = 0x4, offset = 0x4, fixed_abs, tag = 'smem constant byte address 0x4 - core index']
  #allocation1 [shape = 'u32[72,128]{1,0:T(1,128)}', space=vmem, size = 0x9000, scoped, tag = 'internal scratch']
  #allocation2 [shape = 'f32[8,256]{1,0:T(8,128)}', space=vmem, size = 0x2000, scoped, tag = 'scratch operand']
  %s0 = inlined_call_operand.hbm [shape: f32[8,32], index: 0, kind: input, shape index: {}]
  %s1 = inlined_call_operand.hbm [shape: f32[1,32], index: 1, kind: input, shape index: {}]
  %s2 = inlined_call_operand.vmem [shape: f32[1,32], index: 2, kind: input, shape index: {}]
  %s3 = inlined_call_operand.hbm [shape: bf16[256,128], index: 3, kind: input, shape index: {}]
  %s4 = inlined_call_operand.hbm [shape: bf16[32,128], index: 4, kind: input, shape index: {}]
  %s5 = inlined_call_operand.vmem [shape: f32[1,128], index: 5, kind: input, shape index: {}]
  %s6 = inlined_call_operand.hbm [shape: f32[8,128], index: 6, kind: output, shape index: {}]
  %s7 = sld [smem:[#allocation0]]
  $region50: #{tpu_custom_call.1} parent=0
    _
  %s9 = ssub.s32 1, %s7
  %s10 = scalar_select 0, %s9, %s7
  $region1: #{tpu_custom_call.1} parent=0
    #allocation3 [shape = 'u8[4096]{0}', space=vmem, size = 0x1000, scoped, tag = 'input window, operand 0, single buffered']
    #allocation4 [shape = 's32[1]{0}', space=sflag, size = 0x4, scoped, tag = 'scoped memory for tpu_custom_call.1']
    #allocation5 [shape = 's32[1]{0}', space=sflag, size = 0x4, scoped, tag = 'scoped memory for tpu_custom_call.1']
    #allocation6 [shape = 'u8[512]{0}', space=vmem, size = 0x400, scoped, tag = 'input window, operand 1, single buffered']
    #allocation7 [shape = 's32[1]{0}', space=sflag, size = 0x4, scoped, tag = 'scoped memory for tpu_custom_call.1']
    #allocation8 [shape = 'u8[65536]{0}', space=vmem, size = 0x10000, scoped, tag = 'input window, operand 3, single buffered']
    #allocation9 [shape = 'u8[8192]{0}', space=vmem, size = 0x2000, scoped, tag = 'input window, operand 4, single buffered']
    #allocation10 [shape = 's32[1]{0}', space=sflag, size = 0x4, scoped, tag = 'scoped memory for tpu_custom_call.1']
    #allocation11 [shape = 'u8[4096]{0}', space=vmem, size = 0x1000, scoped, tag = 'output window, operand 0, single buffered']
    %11 = vsyncpa [#allocation4], 0
    %12 = vsyncpa [#allocation7], 0
    %13 = vsyncpa [#allocation10], 0
    %14 = vsyncpa [#allocation5], 0
    // Predicated region
    $region2: #{tpu_custom_call.1} parent=1 // pred_check
      _
    $region3: #{tpu_custom_call.1} parent=1 // pred_check_branch
      %16 = sbr.rel (0) target = $region5
    $region4: #{tpu_custom_call.1} parent=1 // pred_region
      %18 = vsyncadd [#allocation4], 0
      %s20 = sshll.u32 %s0, 4
      %s21 = int_to_ptr.hbm [resolvable:$true] %s20
      %s22 = sshll.u32 [#allocation3], 4
      %s23 = int_to_ptr.vmem [resolvable:$true] %s22
      %25 = dma.hbm_to_vmem [thread:$0]  %s21, 128, %s23, [#allocation4]
    $region5: #{tpu_custom_call.1} parent=1 // pred_fallthru
      _
    // Predicated region
    $region6: #{tpu_custom_call.1} parent=1 // pred_check
      _
    $region7: #{tpu_custom_call.1} parent=1 // pred_check_branch
      %27 = sbr.rel (0) target = $region9
    $region8: #{tpu_custom_call.1} parent=1 // pred_region
      %29 = vsyncadd [#allocation7], 0
      %s31 = sshll.u32 %s1, 4
      %s32 = int_to_ptr.hbm [resolvable:$true] %s31
      %s33 = sshll.u32 [#allocation6], 4
      %s34 = int_to_ptr.vmem [resolvable:$true] %s33
      %36 = dma.hbm_to_vmem [thread:$0]  %s32, 16, %s34, [#allocation7]
    $region9: #{tpu_custom_call.1} parent=1 // pred_fallthru
      _
    // Predicated region
    $region10: #{tpu_custom_call.1} parent=1 // pred_check
      _
    $region11: #{tpu_custom_call.1} parent=1 // pred_check_branch
      %38 = sbr.rel (0) target = $region13
    $region12: #{tpu_custom_call.1} parent=1 // pred_region
      _
    $region13: #{tpu_custom_call.1} parent=1 // pred_fallthru
      _
    // Predicated region
    $region14: #{tpu_custom_call.1} parent=1 // pred_check
      _
    $region15: #{tpu_custom_call.1} parent=1 // pred_check_branch
      %40 = sbr.rel (0) target = $region17
    $region16: #{tpu_custom_call.1} parent=1 // pred_region
      %42 = vsyncadd [#allocation7], 0
      %s43 = sshll.u32 %s3, 4
      %s44 = int_to_ptr.hbm [resolvable:$true] %s43
      %s45 = sshll.u32 [#allocation8], 4
      %s46 = int_to_ptr.vmem [resolvable:$true] %s45
      %51 = dma.hbm_to_vmem [thread:$0]  %s44, 2048, %s46, [#allocation7], 64, 64, 4
    $region17: #{tpu_custom_call.1} parent=1 // pred_fallthru
      _
    // Predicated region
    $region18: #{tpu_custom_call.1} parent=1 // pred_check
      _
    $region19: #{tpu_custom_call.1} parent=1 // pred_check_branch
      %53 = sbr.rel (0) target = $region21
    $region20: #{tpu_custom_call.1} parent=1 // pred_region
      %55 = vsyncadd [#allocation10], 0
      %s56 = sshll.u32 %s4, 4
      %s57 = int_to_ptr.hbm [resolvable:$true] %s56
      %s58 = sshll.u32 [#allocation9], 4
      %s59 = int_to_ptr.vmem [resolvable:$true] %s58
      %64 = dma.hbm_to_vmem [thread:$0]  %s57, 256, %s59, [#allocation10], 64, 64, 4
    $region21: #{tpu_custom_call.1} parent=1 // pred_fallthru
      _
    // Predicated region
    $region22: #{tpu_custom_call.1} parent=1 // pred_check
      _
    $region23: #{tpu_custom_call.1} parent=1 // pred_check_branch
      %66 = sbr.rel (0) target = $region25
    $region24: #{tpu_custom_call.1} parent=1 // pred_region
      _
    $region25: #{tpu_custom_call.1} parent=1 // pred_fallthru
      _
    // Predicated region
    $region26: #{tpu_custom_call.1} parent=1 // pred_check
      _
    $region27: #{tpu_custom_call.1} parent=1 // pred_check_branch
      %68 = sbr.rel (0) target = $region29
    $region28: #{tpu_custom_call.1} parent=1 // pred_region
      %70 = dma.done [#allocation4], 128
    $region29: #{tpu_custom_call.1} parent=1 // pred_fallthru
      _
    // Predicated region
    $region30: #{tpu_custom_call.1} parent=1 // pred_check
      _
    $region31: #{tpu_custom_call.1} parent=1 // pred_check_branch
      %72 = sbr.rel (0) target = $region33
    $region32: #{tpu_custom_call.1} parent=1 // pred_region
      %74 = dma.done [#allocation7], 16
    $region33: #{tpu_custom_call.1} parent=1 // pred_fallthru
      _
    // Predicated region
    $region34: #{tpu_custom_call.1} parent=1 // pred_check
      _
    $region35: #{tpu_custom_call.1} parent=1 // pred_check_branch
      %76 = sbr.rel (0) target = $region37
    $region36: #{tpu_custom_call.1} parent=1 // pred_region
      %78 = dma.done [#allocation7], 2048
    $region37: #{tpu_custom_call.1} parent=1 // pred_fallthru
      _
    // Predicated region
    $region38: #{tpu_custom_call.1} parent=1 // pred_check
      _
    $region39: #{tpu_custom_call.1} parent=1 // pred_check_branch
      %80 = sbr.rel (0) target = $region41
    $region40: #{tpu_custom_call.1} parent=1 // pred_region
      %82 = dma.done [#allocation10], 256
    $region41: #{tpu_custom_call.1} parent=1 // pred_fallthru
      _
    %v84 = vld [vmem:[#allocation3] sm:$0xff]
    %vm85 = vcmask 261120
    %v86 = vsel %vm85, %v84, 0.0
    %87 = vadd.xlane.f32.xlu0 %v86
    %v88 = vpop.xlane.xlu0 %87
    %v89 = vrcp.pop 32.0
    %v90 = vmul.f32 32.0, %v89
    %v91 = vsub.f32 1.0, %v90
    %v92 = vmul.f32 %v89, %v91
    %v93 = vadd.f32 %v89, %v92
    %vm94 = vweird.f32 %v89
    %v95 = vsel %vm94, %v89, %v93
    %v96 = vmul.f32 %v88, %v95
    %v97 = vsub.f32 %v84, %v96
    %v98 = vmul.f32 %v97, %v97
    %v99 = vsel %vm85, %v98, 0.0
    %100 = vadd.xlane.f32.xlu0 %v99
    %v101 = vpop.xlane.xlu0 %100
    %v102 = vmul.f32 %v101, %v95
    %v103 = vadd.f32 %v102, 1e-05
    %v104 = vrsqrt.pop %v103
    %v105 = vmul.f32 %v104, %v103
    %v106 = vmul.f32 %v105, %v104
    %v107 = vmul.f32 0.5, %v106
    %v108 = vsub.f32 1.5, %v107
    %v109 = vmul.f32 %v104, %v108
    %vm110 = vweird.f32 %v103
    %vm111 = vweird.f32 %v104
    %vm112 = vmor %vm110, %vm111
    %v113 = vsel %vm112, %v104, %v109
    %v114 = vmul.f32 %v97, %v113
    %v115 = vld [vmem:[#allocation6] sm:$0x1]
    %v117 = vperm.slane %v115, 0
    %v119 = vmul.f32 %v114, %v117
    %v120 = vld [vmem:[%s2] sm:$0x1]
    %v122 = vperm.slane %v120, 0
    %v124 = vadd.f32 %v119, %v122
    %v125 = vmul.f32 %v124, 1.75
    %v126 = vsub.f32 %v125, -3.5
    %v127 = vmul.f32 %v126, %v126
    %v128 = vsub.f32 0.0, %v127
    %v129 = vmul.f32 %v128, 1.442695
    %v130 = vpow.pop %v129
    %131 = vst.msk [vmem:[#allocation2] sm:$0xff] %vm85, %v130
    %v132 = vsub.f32 %v125, -2.5
    %v133 = vmul.f32 %v132, %v132
    %v134 = vsub.f32 0.0, %v133
    %v135 = vmul.f32 %v134, 1.442695
    %v136 = vpow.pop %v135
    %138 = vrot.lane.b32.xlu0 %v136, 32
    %v139 = vpop.permute.xlu0 %138
    %vm141 = vcmask 523520
    %142 = vst.msk [vmem:[#allocation2] sm:$0xff] %vm141, %v139
    %v143 = vsub.f32 %v125, -1.5
    %v144 = vmul.f32 %v143, %v143
    %v145 = vsub.f32 0.0, %v144
    %v146 = vmul.f32 %v145, 1.442695
    %v147 = vpow.pop %v146
    %149 = vrot.lane.b32.xlu0 %v147, 64
    %v150 = vpop.permute.xlu0 %149
    %vm152 = vcmask 785920
    %153 = vst.msk [vmem:[#allocation2] sm:$0xff] %vm152, %v150
    %v154 = vsub.f32 %v125, -0.5
    %v155 = vmul.f32 %v154, %v154
    %v156 = vsub.f32 0.0, %v155
    %v157 = vmul.f32 %v156, 1.442695
    %v158 = vpow.pop %v157
    %160 = vrot.lane.b32.xlu0 %v158, 96
    %v161 = vpop.permute.xlu0 %160
    %vm163 = vcmask 1048320
    %164 = vst.msk [vmem:[#allocation2] sm:$0xff] %vm163, %v161
    %v165 = vsub.f32 %v125, 0.5
    %v166 = vmul.f32 %v165, %v165
    %v167 = vsub.f32 0.0, %v166
    %v168 = vmul.f32 %v167, 1.442695
    %v169 = vpow.pop %v168
    %170 = vst.msk [vmem:[#allocation2 + $0x8] sm:$0xff] %vm85, %v169
    %v171 = vsub.f32 %v125, 1.5
    %v172 = vmul.f32 %v171, %v171
    %v173 = vsub.f32 0.0, %v172
    %v174 = vmul.f32 %v173, 1.442695
    %v175 = vpow.pop %v174
    %177 = vrot.lane.b32.xlu0 %v175, 32
    %v178 = vpop.permute.xlu0 %177
    %180 = vst.msk [vmem:[#allocation2 + $0x8] sm:$0xff] %vm141, %v178
    %v181 = vsub.f32 %v125, 2.5
    %v182 = vmul.f32 %v181, %v181
    %v183 = vsub.f32 0.0, %v182
    %v184 = vmul.f32 %v183, 1.442695
    %v185 = vpow.pop %v184
    %187 = vrot.lane.b32.xlu0 %v185, 64
    %v188 = vpop.permute.xlu0 %187
    %190 = vst.msk [vmem:[#allocation2 + $0x8] sm:$0xff] %vm152, %v188
    %v191 = vsub.f32 %v125, 3.5
    %v192 = vmul.f32 %v191, %v191
    %v193 = vsub.f32 0.0, %v192
    %v194 = vmul.f32 %v193, 1.442695
    %v195 = vpow.pop %v194
    %197 = vrot.lane.b32.xlu0 %v195, 96
    %v198 = vpop.permute.xlu0 %197
    %200 = vst.msk [vmem:[#allocation2 + $0x8] sm:$0xff] %vm163, %v198
    %v201 = vld [vmem:[#allocation2] sm:$0xff]
    %v202 = vld [vmem:[#allocation2 + $0x8] sm:$0xff]
    %v203 = vpack.c.bf16 %v201, %v201
    %v204 = vpack.c.bf16 %v202, %v202
    %v205 = vld [vmem:[#allocation8] sm:$0xf]
    %v206 = vld [vmem:[#allocation8 + $0x4] sm:$0xf]
    %v207 = vld [vmem:[#allocation8 + $0x8] sm:$0xf]
    %v208 = vld [vmem:[#allocation8 + $0xc] sm:$0xf]
    %v209 = vld [vmem:[#allocation8 + $0x10] sm:$0xf]
    %v210 = vld [vmem:[#allocation8 + $0x14] sm:$0xf]
    %v211 = vld [vmem:[#allocation8 + $0x18] sm:$0xf]
    %v212 = vld [vmem:[#allocation8 + $0x1c] sm:$0xf]
    %v213 = vld [vmem:[#allocation8 + $0x20] sm:$0xf]
    %v214 = vld [vmem:[#allocation8 + $0x24] sm:$0xf]
    %v215 = vld [vmem:[#allocation8 + $0x28] sm:$0xf]
    %v216 = vld [vmem:[#allocation8 + $0x2c] sm:$0xf]
    %v217 = vld [vmem:[#allocation8 + $0x30] sm:$0xf]
    %v218 = vld [vmem:[#allocation8 + $0x34] sm:$0xf]
    %v219 = vld [vmem:[#allocation8 + $0x38] sm:$0xf]
    %v220 = vld [vmem:[#allocation8 + $0x3c] sm:$0xf]
    %v221 = vld [vmem:[#allocation8 + $0x40] sm:$0xf]
    %v222 = vld [vmem:[#allocation8 + $0x44] sm:$0xf]
    %v223 = vld [vmem:[#allocation8 + $0x48] sm:$0xf]
    %v224 = vld [vmem:[#allocation8 + $0x4c] sm:$0xf]
    %v225 = vld [vmem:[#allocation8 + $0x50] sm:$0xf]
    %v226 = vld [vmem:[#allocation8 + $0x54] sm:$0xf]
    %v227 = vld [vmem:[#allocation8 + $0x58] sm:$0xf]
    %v228 = vld [vmem:[#allocation8 + $0x5c] sm:$0xf]
    %v229 = vld [vmem:[#allocation8 + $0x60] sm:$0xf]
    %v230 = vld [vmem:[#allocation8 + $0x64] sm:$0xf]
    %v231 = vld [vmem:[#allocation8 + $0x68] sm:$0xf]
    %v232 = vld [vmem:[#allocation8 + $0x6c] sm:$0xf]
    %v233 = vld [vmem:[#allocation8 + $0x70] sm:$0xf]
    %v234 = vld [vmem:[#allocation8 + $0x74] sm:$0xf]
    %v235 = vld [vmem:[#allocation8 + $0x78] sm:$0xf]
    %v236 = vld [vmem:[#allocation8 + $0x7c] sm:$0xf]
    %v237 = vxor.u32 %v84, 2147483648
    %v238 = vmul.f32 %v237, 1.442695
    %v239 = vpow.pop %v238
    %v240 = vadd.f32 %v239, 1.0
    %v241 = vrcp.pop %v240
    %v242 = vmul.f32 %v240, %v241
    %v243 = vsub.f32 1.0, %v242
    %v244 = vmul.f32 %v241, %v243
    %v245 = vadd.f32 %v241, %v244
    %vm246 = vweird.f32 %v240
    %vm247 = vweird.f32 %v241
    %vm248 = vmor %vm246, %vm247
    %v249 = vsel %vm248, %v241, %v245
    %v250 = vand.u32 2147483647, %v240
    %vm251 = vcmp.eq.f32.partialorder %v250, 8.507059e+37
    %v252 = vand.u32 %v240, 2147483648
    %v253 = vor.u32 1.1754944e-38, %v252
    %v254 = vsel %vm251, %v253, %v249
    %v255 = vmul.f32 1.0, %v254
    %v256 = vmul.f32 %v84, %v255
    %v257 = vpack.c.bf16 %v256, %v256
    %v258 = vld [vmem:[#allocation9] sm:$0xf]
    %v259 = vld [vmem:[#allocation9 + $0x4] sm:$0xf]
    %v260 = vld [vmem:[#allocation9 + $0x8] sm:$0xf]
    %v261 = vld [vmem:[#allocation9 + $0xc] sm:$0xf]
    %v266 = vunpack.c.l.b16 %v258
    %v267 = vunpack.c.l.b16 %v259
    %v268 = vunpack.c.l.b16 %v260
    %v269 = vunpack.c.l.b16 %v261
    %v270 = vpack.c.b16 %v267, %v266
    %v271 = vpack.c.b16 %v269, %v268
    %v275 = vsel %vm85, %v257, 0
    %277 = vmatpush.bf16.msra.mxu0 0
    %278 = vmatpush.bf16.msra.mxu0 0
    %279 = vmatpush.bf16.msra.mxu0 0
    %280 = vmatpush.bf16.msra.mxu0 0
    %281 = vmatpush.bf16.msra.mxu0 0
    %282 = vmatpush.bf16.msra.mxu0 0
    %283 = vmatpush.bf16.msra.mxu0 %v271
    %284 = vmatpush.bf16.msra.mxu0 %v270
    %285 = vmatmul.bf16.gmra.mxu0 %v275
    %v286 = vpop.f32.mrf.mxu0
    %v287 = vadd.f32 0.0, %v286
    %v288 = vpop.f32.mrf.mxu0
    %289 = vdwg.mxu0
    %v322 = vunpack.c.l.b16 %v205
    %v323 = vunpack.c.l.b16 %v206
    %v324 = vunpack.c.l.b16 %v207
    %v325 = vunpack.c.l.b16 %v208
    %v326 = vunpack.c.l.b16 %v209
    %v327 = vunpack.c.l.b16 %v210
    %v328 = vunpack.c.l.b16 %v211
    %v329 = vunpack.c.l.b16 %v212
    %v330 = vunpack.c.l.b16 %v213
    %v331 = vunpack.c.l.b16 %v214
    %v332 = vunpack.c.l.b16 %v215
    %v333 = vunpack.c.l.b16 %v216
    %v334 = vunpack.c.l.b16 %v217
    %v335 = vunpack.c.l.b16 %v218
    %v336 = vunpack.c.l.b16 %v219
    %v337 = vunpack.c.l.b16 %v220
    %v338 = vunpack.c.l.b16 %v221
    %v339 = vunpack.c.l.b16 %v222
    %v340 = vunpack.c.l.b16 %v223
    %v341 = vunpack.c.l.b16 %v224
    %v342 = vunpack.c.l.b16 %v225
    %v343 = vunpack.c.l.b16 %v226
    %v344 = vunpack.c.l.b16 %v227
    %v345 = vunpack.c.l.b16 %v228
    %v346 = vunpack.c.l.b16 %v229
    %v347 = vunpack.c.l.b16 %v230
    %v348 = vunpack.c.l.b16 %v231
    %v349 = vunpack.c.l.b16 %v232
    %v350 = vunpack.c.l.b16 %v233
    %v351 = vunpack.c.l.b16 %v234
    %v352 = vunpack.c.l.b16 %v235
    %v353 = vunpack.c.l.b16 %v236
    %v354 = vpack.c.b16 %v323, %v322
    %v355 = vpack.c.b16 %v325, %v324
    %v356 = vpack.c.b16 %v327, %v326
    %v357 = vpack.c.b16 %v329, %v328
    %v358 = vpack.c.b16 %v331, %v330
    %v359 = vpack.c.b16 %v333, %v332
    %v360 = vpack.c.b16 %v335, %v334
    %v361 = vpack.c.b16 %v337, %v336
    %v362 = vpack.c.b16 %v339, %v338
    %v363 = vpack.c.b16 %v341, %v340
    %v364 = vpack.c.b16 %v343, %v342
    %v365 = vpack.c.b16 %v345, %v344
    %v366 = vpack.c.b16 %v347, %v346
    %v367 = vpack.c.b16 %v349, %v348
    %v368 = vpack.c.b16 %v351, %v350
    %v369 = vpack.c.b16 %v353, %v352
    %386 = vmatpush.bf16.msra.mxu0 %v361
    %387 = vmatpush.bf16.msra.mxu0 %v360
    %388 = vmatpush.bf16.msra.mxu0 %v359
    %389 = vmatpush.bf16.msra.mxu0 %v358
    %390 = vmatpush.bf16.msra.mxu0 %v357
    %391 = vmatpush.bf16.msra.mxu0 %v356
    %392 = vmatpush.bf16.msra.mxu0 %v355
    %393 = vmatpush.bf16.msra.mxu0 %v354
    %394 = vmatmul.bf16.gmra.mxu0 %v203
    %v395 = vpop.f32.mrf.mxu0
    %v396 = vadd.f32 %v287, %v395
    %v397 = vpop.f32.mrf.mxu0
    %398 = vdwg.mxu0
    %399 = vmatpush.bf16.msra.mxu0 %v369
    %400 = vmatpush.bf16.msra.mxu0 %v368
    %401 = vmatpush.bf16.msra.mxu0 %v367
    %402 = vmatpush.bf16.msra.mxu0 %v366
    %403 = vmatpush.bf16.msra.mxu0 %v365
    %404 = vmatpush.bf16.msra.mxu0 %v364
    %405 = vmatpush.bf16.msra.mxu0 %v363
    %406 = vmatpush.bf16.msra.mxu0 %v362
    %407 = vmatmul.bf16.gmra.mxu0 %v204
    %v408 = vpop.f32.mrf.mxu0
    %v409 = vadd.f32 %v396, %v408
    %v410 = vpop.f32.mrf.mxu0
    %411 = vdwg.mxu0
    %v412 = vld [vmem:[%s5] sm:$0x1]
    %v414 = vperm.slane %v412, 0
    %v416 = vadd.f32 %v409, %v414
    %417 = vst [vmem:[#allocation11] sm:$0xff] %v416
    // Predicated region
    $region42: #{tpu_custom_call.1} parent=1 // pred_check
      _
    $region43: #{tpu_custom_call.1} parent=1 // pred_check_branch
      %419 = sbr.rel (0) target = $region45
    $region44: #{tpu_custom_call.1} parent=1 // pred_region
      %421 = vsyncadd [#allocation5], 0
      %s423 = sshll.u32 [#allocation11], 4
      %s424 = int_to_ptr.vmem [resolvable:$true] %s423
      %s425 = sshll.u32 %s6, 4
      %s426 = int_to_ptr.hbm [resolvable:$true] %s425
      %428 = dma.vmem_to_hbm [thread:$0]  %s424, 128, %s426, [#allocation5]
    $region45: #{tpu_custom_call.1} parent=1 // pred_fallthru
      _
    // Predicated region
    $region46: #{tpu_custom_call.1} parent=1 // pred_check
      _
    $region47: #{tpu_custom_call.1} parent=1 // pred_check_branch
      %430 = sbr.rel (0) target = $region49
    $region48: #{tpu_custom_call.1} parent=1 // pred_region
      %432 = dma.done [#allocation5], 128
    $region49: #{tpu_custom_call.1} parent=1 // pred_fallthru
      _
    %433 = vsyncpa [#allocation4], 1
    %434 = vsyncpa [#allocation7], 1
    %435 = vsyncpa [#allocation10], 1
    %436 = vsyncpa [#allocation5], 1

</llo_original>
